<compile_context>
chip_gen: v7x
topology: tpu7x:2x2x1
jax: 0.10.0
libtpu: 0.0.40
codegen_flags: <defaults>
</compile_context>

<pallas_src>
import functools

import numpy as np
import jax
import jax.numpy as jnp
from jax.experimental import pallas as pl
from jax.experimental.pallas import tpu as pltpu

LANE = 128


def _vmem_limit_bytes():
    # ~48 MiB on v7x (64 MiB phys), ~100 MiB on v5e/v6e (128 MiB phys).
    try:
        cap = int(getattr(pltpu.get_tpu_info(), "vmem_capacity_bytes",
                          64 * 1024 * 1024))
    except Exception:
        cap = 64 * 1024 * 1024
    return int(min(max(cap - 16 * 1024 * 1024, 32 * 1024 * 1024),
                   100 * 1024 * 1024))


VMEM_LIMIT = _vmem_limit_bytes()


def _round_up(n, m=LANE):
    return ((n + m - 1) // m) * m


def _pad_axis(a, axis, target):
    pad = target - a.shape[axis]
    if pad <= 0:
        return a
    widths = [(0, 0)] * a.ndim
    widths[axis] = (0, pad)
    return jnp.pad(a, widths)


# ---------------------------------------------------------------------------
# Host-side block-sparsity schedule: per (row-tile i, etype e), the compacted
# list of nonzero k blocks (padded to max_k with 0) and the nonzero count.
# ---------------------------------------------------------------------------
def build_block_schedule(a, tm, tk):
    a_np = np.asarray(a) != 0                       # (E, N, N) bool
    E, N, _ = a_np.shape
    ni, nk = N // tm, N // tk
    blk_nz = a_np.reshape(E, ni, tm, nk, tk).any(axis=(2, 4))   # (E, ni, nk)
    max_k = max(int(blk_nz.sum(axis=-1).max()), 1)
    klist = np.zeros((ni, E, max_k), np.int32)
    kcount = np.zeros((ni, E), np.int32)
    for i in range(ni):
        for e in range(E):
            ks = np.nonzero(blk_nz[e, i])[0]
            kcount[i, e] = ks.size
            klist[i, e, : ks.size] = ks
    return jnp.asarray(klist.reshape(-1)), jnp.asarray(kcount.reshape(-1)), max_k


# ---------------------------------------------------------------------------
# Stage 1: fused per-edge-type (and self-loop) feature transform
#   HW = H @ [W_0 | W_1 | ... | (W_sl)]     (bf16 output, lane-dense)
# ---------------------------------------------------------------------------
def _hw_kernel(h_ref, w_ref, o_ref):
    o_ref[...] = jnp.dot(
        h_ref[...], w_ref[...], preferred_element_type=jnp.float32
    ).astype(o_ref.dtype)


def feature_transform(h_b, w_all_b, *, tm):
    N, f_in = h_b.shape
    _, cols = w_all_b.shape
    ni = N // tm
    return pl.pallas_call(
        _hw_kernel,
        out_shape=jax.ShapeDtypeStruct((N, cols), jnp.bfloat16),
        grid_spec=pltpu.PrefetchScalarGridSpec(
            num_scalar_prefetch=0,
            grid=(ni,),
            in_specs=[
                pl.BlockSpec((tm, f_in), lambda i: (i, 0)),
                pl.BlockSpec((f_in, cols), lambda i: (0, 0)),
            ],
            out_specs=pl.BlockSpec((tm, cols), lambda i: (i, 0)),
        ),
        compiler_params=pltpu.CompilerParams(
            dimension_semantics=("parallel",),
            vmem_limit_bytes=VMEM_LIMIT,
        ),
    )(h_b, w_all_b)


# ---------------------------------------------------------------------------
# Stage 2: k-tiled, block-sparse aggregation over edge types
#   out[i] = sum_e (1/deg_e[i]) * sum_{k in nz(i,e)} A01[e,i,k] @ HW[k, e]  + b
# grid = (row_tiles, E, max_nonzero_k); e and k are "arbitrary" reductions.
# ---------------------------------------------------------------------------
def _agg_body(kcnt_ref, deg_ref, a_ref, hw_ref, acc_e, acc_tot):
    i = pl.program_id(0)
    e = pl.program_id(1)
    kk = pl.program_id(2)
    n_e = pl.num_programs(1)
    n_kk = pl.num_programs(2)

    @pl.when(kk == 0)
    def _():
        acc_e[...] = jnp.zeros_like(acc_e)

    @pl.when((e == 0) & (kk == 0))
    def _():
        acc_tot[...] = jnp.zeros_like(acc_tot)

    # Only accumulate real (non-padded) nonzero blocks.
    @pl.when(kk < kcnt_ref[i * n_e + e])
    def _():
        a_blk = a_ref[0].astype(jnp.float32).astype(jnp.bfloat16)  # exact 0/1
        acc_e[...] += jnp.dot(a_blk, hw_ref[...],
                              preferred_element_type=jnp.float32)

    # Per-etype right normalization applied once, in f32, at the etype end.
    @pl.when(kk == n_kk - 1)
    def _():
        acc_tot[...] += deg_ref[0] * acc_e[...]

    return (e == n_e - 1) & (kk == n_kk - 1)


def _agg_kernel(klist_ref, kcnt_ref, deg_ref, a_ref, hw_ref, bsum_ref,
                o_ref, acc_e, acc_tot, *, apply_relu):
    del klist_ref  # only used by index_maps
    is_last = _agg_body(kcnt_ref, deg_ref, a_ref, hw_ref, acc_e, acc_tot)

    @pl.when(is_last)
    def _():
        out = acc_tot[...] + bsum_ref[...]
        if apply_relu:
            out = jnp.maximum(out, 0.0)
        o_ref[...] = out.astype(o_ref.dtype)
        # TODO(synk): training-mode dropout would go here via pltpu.prng_seed +
        # pltpu.stateful_bernoulli; eval mode => identity.


def _agg_sl_kernel(klist_ref, kcnt_ref, deg_ref, a_ref, hw_ref, sl_ref,
                   bsum_ref, o_ref, acc_e, acc_tot):
    del klist_ref
    is_last = _agg_body(kcnt_ref, deg_ref, a_ref, hw_ref, acc_e, acc_tot)

    @pl.when(is_last)
    def _():
        # Self-loop term was precomputed in stage 1 (extra column block of HW).
        o_ref[...] = (acc_tot[...] + bsum_ref[...]
                      + sl_ref[...].astype(jnp.float32)).astype(o_ref.dtype)


def hetero_aggregate(a_i8, deg_inv, hw_b, b_sum, klist, kcount, *, tm, tk,
                     max_k, apply_relu, out_dtype, with_self_loop, n_etypes):
    E = n_etypes
    N = a_i8.shape[1]
    f_out = b_sum.shape[1]
    ni = N // tm

    def a_map(i, e, kk, kl, kc):
        return (e, i, kl[(i * E + e) * max_k + kk])

    def hw_map(i, e, kk, kl, kc):
        return (kl[(i * E + e) * max_k + kk], e)

    in_specs = [
        pl.BlockSpec((1, tm, 1), lambda i, e, kk, kl, kc: (e, i, 0)),   # deg_inv
        pl.BlockSpec((1, tm, tk), a_map),                               # A (int8)
        pl.BlockSpec((tk, f_out), hw_map),                              # HW col e
    ]
    inputs = [deg_inv, a_i8, hw_b]
    if with_self_loop:
        # Same HW array, column block E == precomputed H @ W_sl.
        in_specs.append(pl.BlockSpec((tm, f_out),
                                     lambda i, e, kk, kl, kc: (i, E)))
        inputs.append(hw_b)
        kernel = _agg_sl_kernel
    else:
        kernel = functools.partial(_agg_kernel, apply_relu=apply_relu)
    in_specs.append(pl.BlockSpec((1, f_out), lambda i, e, kk, kl, kc: (0, 0)))
    inputs.append(b_sum)

    return pl.pallas_call(
        kernel,
        out_shape=jax.ShapeDtypeStruct((N, f_out), out_dtype),
        grid_spec=pltpu.PrefetchScalarGridSpec(
            num_scalar_prefetch=2,
            grid=(ni, E, max_k),
            in_specs=in_specs,
            out_specs=pl.BlockSpec((tm, f_out), lambda i, e, kk, kl, kc: (i, 0)),
            scratch_shapes=[pltpu.VMEM((tm, f_out), jnp.float32),   # per-etype acc
                            pltpu.VMEM((tm, f_out), jnp.float32)],  # total acc
        ),
        compiler_params=pltpu.CompilerParams(
            dimension_semantics=("parallel", "arbitrary", "arbitrary"),
            vmem_limit_bytes=VMEM_LIMIT,
        ),
    )(klist, kcount, *inputs)


# ---------------------------------------------------------------------------
# RGCN forward (Pallas) and pure-JAX reference
# ---------------------------------------------------------------------------
def rgcn_forward(adjs_01, deg_invs, x, weights, biases, w_sl, b_sl, *,
                 out_size, tk=None):
    """adjs_01: per-layer (E, N, N) 0/1 adjacency; deg_invs: per-layer (E, N, 1)."""
    n_layers = len(weights)
    N = x.shape[0]

    # Row tile: cap at N//2 so the parallel axis has >= 2 programs (v7x megacore).
    tm = N
    for cand in (1024, 512, 256, 128):
        if cand <= N // 2 and N % cand == 0:
            tm = cand
            break
    # Contraction tile (bounds VMEM independent of N).
    if tk is None:
        tk = N
        for cand in (2048, 1024, 512, 256, 128):
            if cand <= N and N % cand == 0:
                tk = cand
                break
    assert N % tm == 0 and N % tk == 0

    adjs_i8 = [(a != 0).astype(jnp.int8) for a in adjs_01]
    schedules = [build_block_schedule(a, tm, tk) for a in adjs_01]

    h = _pad_axis(x.astype(jnp.float32), 1,
                  _round_up(x.shape[1])).astype(jnp.bfloat16)

    for l in range(n_layers):
        E, f_in, f_out = weights[l].shape
        f_in_p, f_out_p = _round_up(f_in), _round_up(f_out)
        last = l == n_layers - 1

        # Fused stage-1 weight: per-etype column blocks (+ self-loop on last layer).
        w_blocks = [_pad_axis(_pad_axis(weights[l][e], 0, f_in_p), 1, f_out_p)
                    for e in range(E)]
        if last:
            w_blocks.append(_pad_axis(_pad_axis(w_sl, 0, f_in_p), 1, f_out_p))
        w_all = jnp.concatenate(w_blocks, axis=1).astype(jnp.bfloat16)

        b_sum = _pad_axis(biases[l].sum(axis=0).reshape(1, -1), 1, f_out_p)
        if last:
            b_sum = b_sum + _pad_axis(b_sl.reshape(1, -1), 1, f_out_p)
        b_sum = b_sum.astype(jnp.float32)

        hw = feature_transform(h, w_all, tm=tm)      # (N, (E[+1]) * f_out_p) bf16

        klist, kcnt, max_k = schedules[l]
        h = hetero_aggregate(
            adjs_i8[l], deg_invs[l], hw, b_sum, klist, kcnt,
            tm=tm, tk=tk, max_k=max_k, apply_relu=not last,
            out_dtype=jnp.float32 if last else jnp.bfloat16,
            with_self_loop=last, n_etypes=E,
        )
    return h[:, :out_size]


def rgcn_forward_ref(adjs_01, deg_invs, x, weights, biases, w_sl, b_sl):
    """Pure-JAX reference matching the kernel's bf16 MXU inputs / f32 accum."""
    n_layers = len(weights)
    h = x.astype(jnp.float32).astype(jnp.bfloat16)
    for l in range(n_layers):
        last = l == n_layers - 1
        E = weights[l].shape[0]
        out = jnp.zeros((h.shape[0], weights[l].shape[2]), jnp.float32)
        for e in range(E):
            hw = jnp.dot(h, weights[l][e].astype(jnp.bfloat16),
                         preferred_element_type=jnp.float32).astype(jnp.bfloat16)
            msg = jnp.dot(adjs_01[l][e].astype(jnp.bfloat16), hw,
                          preferred_element_type=jnp.float32)
            out = out + deg_invs[l][e] * msg
        out = out + biases[l].sum(axis=0)
        if not last:
            h = jnp.maximum(out, 0.0).astype(jnp.bfloat16)
        else:
            sl = jnp.dot(h, w_sl.astype(jnp.bfloat16),
                         preferred_element_type=jnp.float32).astype(jnp.bfloat16)
            h = out + sl.astype(jnp.float32) + b_sl
    return h


# ---------------------------------------------------------------------------
# Main
# ---------------------------------------------------------------------------
if __name__ == "__main__":
    key = jax.random.PRNGKey(0)
    keys = jax.random.split(key, 64)
    kit = iter(keys)

    N = 512          # nodes per block (num_src == num_dst == num_seeds)
    E = 3            # number of edge types
    in_size, hid_size, out_size = 16, 32, 8
    n_layers = 3

    x = jax.random.normal(next(kit), (N, in_size), jnp.float32)

    weights, biases, adjs_01, deg_invs = [], [], [], []
    for l in range(n_layers):
        f_in = in_size if l == 0 else hid_size
        f_out = out_size if l == n_layers - 1 else hid_size
        weights.append(0.1 * jax.random.normal(next(kit), (E, f_in, f_out),
                                               jnp.float32))
        biases.append(0.05 * jax.random.normal(next(kit), (E, 1, f_out),
                                               jnp.float32))
        # Per-etype 0/1 adjacency restricted to a source band -> some (tm, tk)
        # blocks are fully empty, exercising the block-sparse skip schedule.
        a_list = []
        for e in range(E):
            lo, hi = (e * N) // E, ((e + 1) * N) // E
            band = (jax.random.uniform(next(kit), (N, hi - lo)) < 0.05)
            a_e = jnp.zeros((N, N), jnp.float32).at[:, lo:hi].set(
                band.astype(jnp.float32))
            a_list.append(a_e)
        a = jnp.stack(a_list)                                       # (E, N, N)
        deg = jnp.clip(a.sum(axis=-1, keepdims=True), 1.0, None)    # (E, N, 1)
        adjs_01.append(a)
        deg_invs.append((1.0 / deg).astype(jnp.float32))

    w_sl = 0.1 * jax.random.normal(next(kit), (hid_size, out_size), jnp.float32)
    b_sl = 0.05 * jax.random.normal(next(kit), (out_size,), jnp.float32)

    # tk=128 so nk=4 and the compacted k-list (max_k=2 here) actually skips DMA.
    out = rgcn_forward(adjs_01, deg_invs, x, weights, biases, w_sl, b_sl,
                       out_size=out_size, tk=128)
    out = jax.block_until_ready(out)

    ref = rgcn_forward_ref(adjs_01, deg_invs, x, weights, biases, w_sl, b_sl)
    assert out.shape == (N, out_size), out.shape
    assert jnp.allclose(out, ref, atol=3e-3, rtol=3e-3), float(
        jnp.max(jnp.abs(out - ref)))

    print("KERNEL_OK")
</pallas_src>

<mosaic_0001>
module attributes {stable_mosaic.version = 11 : i64} {
  func.func @_hw_kernel(%arg0: i32, %arg1: memref<256x128xbf16, #tpu.memory_space<vmem>>, %arg2: memref<128x384xbf16, #tpu.memory_space<vmem>>, %arg3: memref<256x384xbf16, #tpu.memory_space<vmem>>) attributes {dimension_semantics = [#tpu.dimension_semantics<parallel>], iteration_bounds = array<i64: 2>, scalar_prefetch = 0 : i64, scratch_operands = 0 : i64, tpu.core_type = #tpu.core_type<tc>, window_params = [{transform_indices = @transform_0, window_bounds = array<i64: 256, 128>}, {pipeline_mode = #tpu.pipeline_mode<synchronous>, transform_indices = @transform_1, window_bounds = array<i64: 128, 384>}, {transform_indices = @transform_2, window_bounds = array<i64: 256, 384>}]} {
    %c0 = arith.constant 0 : index
    %c0_0 = arith.constant 0 : index
    %0 = vector.load %arg1[%c0, %c0_0] : memref<256x128xbf16, #tpu.memory_space<vmem>>, vector<256x128xbf16>
    %c0_1 = arith.constant 0 : index
    %c0_2 = arith.constant 0 : index
    %1 = vector.load %arg2[%c0_1, %c0_2] : memref<128x384xbf16, #tpu.memory_space<vmem>>, vector<128x384xbf16>
    %cst = arith.constant dense<0.000000e+00> : vector<256x384xf32>
    %2 = tpu.matmul %0, %1, %cst {dimension_numbers = #tpu.dot_dimension_numbers<[1], [0], [0], [1], [0, 0, 1, 1], [], []>} : vector<256x128xbf16>, vector<128x384xbf16>, vector<256x384xf32> -> vector<256x384xf32>
    %3 = arith.truncf %2 : vector<256x384xf32> to vector<256x384xbf16>
    %c0_3 = arith.constant 0 : index
    %c0_4 = arith.constant 0 : index
    %4 = vector.load %arg3[%c0_3, %c0_4] : memref<256x384xbf16, #tpu.memory_space<vmem>>, vector<256x384xbf16>
    tpu.vector_store %arg3[%c0_3, %c0_4], %3 {strides = array<i32>} : memref<256x384xbf16, #tpu.memory_space<vmem>>, vector<256x384xbf16>,
    return
  }
  func.func @transform_0(%arg0: i32) -> (i32, i32) {
    %c0_i32 = arith.constant 0 : i32
    %c0_i32_0 = arith.constant 0 : i32
    return %arg0, %c0_i32 : i32, i32
  }
  func.func @transform_1(%arg0: i32) -> (i32, i32) {
    %c0_i32 = arith.constant 0 : i32
    %c0_i32_0 = arith.constant 0 : i32
    %c0_i32_1 = arith.constant 0 : i32
    return %c0_i32, %c0_i32_0 : i32, i32
  }
  func.func @transform_2(%arg0: i32) -> (i32, i32) {
    %c0_i32 = arith.constant 0 : i32
    %c0_i32_0 = arith.constant 0 : i32
    return %arg0, %c0_i32 : i32, i32
  }
}

</mosaic_0001>

<llo_original>
// kernel: tpu_custom_call.1
$region0: #{tpu_custom_call.1}
  #allocation0 [shape = 'u32[]', space=smem, size = 0x4, offset = 0x4, fixed_abs, tag = 'smem constant byte address 0x4 - core index']
  #allocation1 [shape = 'u32[144,128]{1,0:T(1,128)}', space=vmem, size = 0x12000, scoped, tag = 'internal scratch']
  %s0 = inlined_call_operand.hbm [shape: bf16[512,128], index: 0, kind: input, shape index: {}]
  %s1 = inlined_call_operand.hbm [shape: bf16[128,384], index: 1, kind: input, shape index: {}]
  %s2 = inlined_call_operand.hbm [shape: bf16[512,384], index: 2, kind: output, shape index: {}]
  %s3 = sld [smem:[#allocation0]]
  $region49: #{tpu_custom_call.1} parent=0
    _
  %s5 = ssub.s32 1, %s3
  %s6 = scalar_select 0, %s5, %s3
  $region1: #{tpu_custom_call.1} parent=0
    #allocation2 [shape = 'u8[131072]{0}', space=vmem, size = 0x20000, scoped, tag = 'input window, operand 0']
    #allocation3 [shape = 's32[2]{0}', space=sflag, size = 0x8, scoped, tag = 'scoped memory for tpu_custom_call.1']
    #allocation4 [shape = 's32[2]{0}', space=sflag, size = 0x8, scoped, tag = 'scoped memory for tpu_custom_call.1']
    #allocation5 [shape = 'u8[98304]{0}', space=vmem, size = 0x18000, scoped, tag = 'input window, operand 1, single buffered']
    #allocation6 [shape = 's32[1]{0}', space=sflag, size = 0x4, scoped, tag = 'scoped memory for tpu_custom_call.1']
    #allocation7 [shape = 'u8[393216]{0}', space=vmem, size = 0x60000, scoped, tag = 'output window, operand 0']
    %7 = vsyncpa [#allocation3], 0
    %s8 = scalar_lea.sflag [#allocation3], 1
    %9 = vsyncpa %s8, 0
    %10 = vsyncpa [#allocation6], 0
    %11 = vsyncpa [#allocation4], 0
    %s12 = scalar_lea.sflag [#allocation4], 1
    %13 = vsyncpa %s12, 0
    loop: start=0, step=1, limit=4
    $region2: #{tpu_custom_call.1} parent=1 // loop_pre_header
      _
    $region3: #{tpu_custom_call.1} parent=1 // loop_header
      %s15 = sphi 0, %s19
      %p16 = scmp.ge.s32.totalorder %s15, 4
      %s25 = sphi 0, %s27
      %s28 = sphi 0, %s25
      %s29 = sphi 0, %s28
      %s45 = sphi 0, %s29
      %s49 = sphi 0, %s49
      %s51 = sphi 0, %s49
      %s52 = sphi 0, %s51
      %s66 = sphi 0, %s52
      %s72 = sphi 0, %s74
      %s75 = sphi 0, %s72
      %s76 = sphi 0, %s75
      %s92 = sphi 0, %s76
    $region4: #{tpu_custom_call.1} parent=1 // loop_header_branch
      %18 = sbr.rel (%p16) target = $region8
    $region5: #{tpu_custom_call.1} parent=1 // loop_body
      %s20 = ssub.s32 %s15, 1
      %s21 = ssub.s32 %s15, 2
      %s22 = sadd.s32 %s15, 1
      %s23 = ssub.s32 %s15, %s22
      %p24 = scmp.eq.s32.totalorder %s23, 0
      %s26 = sadd.s32 %s25, 1
      %s27 = scalar_select %p24, %s25, %s26
      %p30 = pneg %p24
      %p31 = scmp.eq.s32.totalorder %s15, 1
      %p32 = por %p30, %p31
      %p33 = scmp.ne.s32.totalorder %s25, %s28
      %p34 = scmp.eq.s32.totalorder %s15, 0
      %p35 = por %p33, %p34
      %p36 = scmp.ne.s32.totalorder %s25, %s28
      %p37 = scmp.eq.s32.totalorder %s20, 1
      %p38 = por %p36, %p37
      %p39 = scmp.ne.s32.totalorder %s28, %s29
      %p40 = scmp.eq.s32.totalorder %s20, 0
      %p41 = por %p39, %p40
      %p42 = scmp.ne.s32.totalorder %s28, %s29
      %p43 = scmp.eq.s32.totalorder %s21, 1
      %p44 = por %p42, %p43
      %p46 = scmp.ne.s32.totalorder %s29, %s45
      %p47 = scmp.eq.s32.totalorder %s21, 0
      %p48 = por %p46, %p47
      %s50 = sadd.s32 %s49, 1
      %p53 = scmp.eq.s32.totalorder %s15, 1
      %p54 = scmp.ne.s32.totalorder %s49, %s51
      %p55 = scmp.eq.s32.totalorder %s15, 0
      %p56 = por %p54, %p55
      %p57 = scmp.ne.s32.totalorder %s49, %s51
      %p58 = scmp.eq.s32.totalorder %s20, 1
      %p59 = por %p57, %p58
      %p60 = scmp.ne.s32.totalorder %s51, %s52
      %p61 = scmp.eq.s32.totalorder %s20, 0
      %p62 = por %p60, %p61
      %p63 = scmp.ne.s32.totalorder %s51, %s52
      %p64 = scmp.eq.s32.totalorder %s21, 1
      %p65 = por %p63, %p64
      %p67 = scmp.ne.s32.totalorder %s52, %s66
      %p68 = scmp.eq.s32.totalorder %s21, 0
      %p69 = por %p67, %p68
      %s70 = ssub.s32 %s15, %s22
      %p71 = scmp.eq.s32.totalorder %s70, 0
      %s73 = sadd.s32 %s72, 1
      %s74 = scalar_select %p71, %s72, %s73
      %p77 = pneg %p71
      %p78 = scmp.eq.s32.totalorder %s15, 1
      %p79 = por %p77, %p78
      %p80 = scmp.ne.s32.totalorder %s72, %s75
      %p81 = scmp.eq.s32.totalorder %s15, 0
      %p82 = por %p80, %p81
      %p83 = scmp.ne.s32.totalorder %s72, %s75
      %p84 = scmp.eq.s32.totalorder %s20, 1
      %p85 = por %p83, %p84
      %p86 = scmp.ne.s32.totalorder %s75, %s76
      %p87 = scmp.eq.s32.totalorder %s20, 0
      %p88 = por %p86, %p87
      %p89 = scmp.ne.s32.totalorder %s75, %s76
      %p90 = scmp.eq.s32.totalorder %s21, 1
      %p91 = por %p89, %p90
      %p93 = scmp.ne.s32.totalorder %s76, %s92
      %p94 = scmp.eq.s32.totalorder %s21, 0
      %p95 = por %p93, %p94
      %p96 = scmp.le.s32.totalorder 1, %s15
      %p97 = scmp.lt.s32.totalorder %s15, 3
      %p98 = pnand %p96, %p97
      %p99 = pneg %p98
      // Predicated region
      $region9: #{tpu_custom_call.1} parent=5 // pred_check
        _
      $region10: #{tpu_custom_call.1} parent=5 // pred_check_branch
        %101 = sbr.rel (%p98) target = $region12
      $region11: #{tpu_custom_call.1} parent=5 // pred_region
        %s102 = ssub.s32 %s15, 1
        // Predicated region
        $region13: #{tpu_custom_call.1} parent=11 // pred_check
          %p103 = pneg %p62
        $region14: #{tpu_custom_call.1} parent=11 // pred_check_branch
          %105 = sbr.rel (%p103) target = $region16
        $region15: #{tpu_custom_call.1} parent=11 // pred_region
          %s107 = ssub.s32 3072, 3072
          %108 = vsyncadd [#allocation6], %s107
          %s109 = sshll.u32 [#allocation5], 4
          %s110 = int_to_ptr.vmem [resolvable:$true] %s109
          %115 = dma.hbm_to_vmem [thread:$0]  %s1, 3072, %s110, [#allocation6], 192, 192, 12
        $region16: #{tpu_custom_call.1} parent=11 // pred_fallthru
          _
      $region12: #{tpu_custom_call.1} parent=5 // pred_fallthru
        _
      %p116 = scmp.lt.s32.totalorder %s15, 2
      // Predicated region
      $region17: #{tpu_custom_call.1} parent=5 // pred_check
        %p117 = pneg %p116
      $region18: #{tpu_custom_call.1} parent=5 // pred_check_branch
        %119 = sbr.rel (%p117) target = $region20
      $region19: #{tpu_custom_call.1} parent=5 // pred_region
        // Predicated region
        $region21: #{tpu_custom_call.1} parent=19 // pred_check
          %p120 = pneg %p35
        $region22: #{tpu_custom_call.1} parent=19 // pred_check_branch
          %122 = sbr.rel (%p120) target = $region24
        $region23: #{tpu_custom_call.1} parent=19 // pred_region
          %s123 = sand.u32 %s25, 1
          %s124 = scalar_lea.sflag [#allocation3], %s123
          %s125 = sand.u32 %s25, 1
          %s126 = smul.addr %s125, 128
          %s127 = scalar_lea.vmem [#allocation2], %s126
          %s128 = smul.u32 32, %s15
          %s130 = ssub.s32 2048, 2048
          %131 = vsyncadd %s124, %s130
          %s132 = smul.addr %s128, 64
          %s133 = scalar_lea.hbm %s0, %s132
          %s134 = sshll.u32 %s127, 4
          %s135 = int_to_ptr.vmem [resolvable:$true] %s134
          %140 = dma.hbm_to_vmem [thread:$0]  %s133, 2048, %s135, %s124, 64, 64, 4
        $region24: #{tpu_custom_call.1} parent=19 // pred_fallthru
          _
      $region20: #{tpu_custom_call.1} parent=5 // pred_fallthru
        _
      %p141 = scmp.le.s32.totalorder 1, %s15
      %p142 = scmp.lt.s32.totalorder %s15, 3
      %p143 = pnand %p141, %p142
      %p144 = pneg %p143
      // Predicated region
      $region25: #{tpu_custom_call.1} parent=5 // pred_check
        _
      $region26: #{tpu_custom_call.1} parent=5 // pred_check_branch
        %146 = sbr.rel (%p143) target = $region28
      $region27: #{tpu_custom_call.1} parent=5 // pred_region
        %s147 = ssub.s32 %s15, 1
        %s148 = sand.u32 %s28, 1
        %s149 = scalar_lea.sflag [#allocation3], %s148
        %s150 = sand.u32 %s28, 1
        %s151 = smul.addr %s150, 128
        %s152 = scalar_lea.vmem [#allocation2], %s151
        // Predicated region
        $region29: #{tpu_custom_call.1} parent=27 // pred_check
          %p153 = pneg %p41
        $region30: #{tpu_custom_call.1} parent=27 // pred_check_branch
          %155 = sbr.rel (%p153) target = $region32
        $region31: #{tpu_custom_call.1} parent=27 // pred_region
          %156 = dma.done %s149, 2048
        $region32: #{tpu_custom_call.1} parent=27 // pred_fallthru
          _
        // Predicated region
        $region33: #{tpu_custom_call.1} parent=27 // pred_check
          %p157 = pneg %p62
        $region34: #{tpu_custom_call.1} parent=27 // pred_check_branch
          %159 = sbr.rel (%p157) target = $region36
        $region35: #{tpu_custom_call.1} parent=27 // pred_region
          %160 = dma.done [#allocation6], 3072
        $region36: #{tpu_custom_call.1} parent=27 // pred_fallthru
          _
        %s161 = sand.u32 %s28, 1
        %s162 = scalar_lea.sflag [#allocation3], %s161
        %s163 = sand.u32 %s28, 1
        %s164 = smul.addr %s163, 128
        %s165 = scalar_lea.vmem [#allocation2], %s164
        %p166 = pneg %p41
        %p167 = pneg %p38
        %p168 = pneg %p62
        %p169 = pneg %p59
        %p170 = pneg %p88
        %p171 = pneg %p85
        %s172 = sand.u32 %s75, 1
        %s173 = scalar_lea.sflag [#allocation4], %s172
        %s174 = sand.u32 %s75, 1
        %s175 = smul.addr %s174, 384
        %s176 = scalar_lea.vmem [#allocation7], %s175
        %s177 = smul.u32 32, %s20
        %s178 = smul.u32 32, %s20
        %v180 = vld [vmem:[%s152] sm:$0xf]
        %v181 = vld [vmem:[%s152 + $0x4] sm:$0xf]
        %v182 = vld [vmem:[%s152 + $0x8] sm:$0xf]
        %v183 = vld [vmem:[%s152 + $0xc] sm:$0xf]
        %v184 = vld [vmem:[%s152 + $0x10] sm:$0xf]
        %v185 = vld [vmem:[%s152 + $0x14] sm:$0xf]
        %v186 = vld [vmem:[%s152 + $0x18] sm:$0xf]
        %v187 = vld [vmem:[%s152 + $0x1c] sm:$0xf]
        %v188 = vld [vmem:[%s152 + $0x20] sm:$0xf]
        %v189 = vld [vmem:[%s152 + $0x24] sm:$0xf]
        %v190 = vld [vmem:[%s152 + $0x28] sm:$0xf]
        %v191 = vld [vmem:[%s152 + $0x2c] sm:$0xf]
        %v192 = vld [vmem:[%s152 + $0x30] sm:$0xf]
        %v193 = vld [vmem:[%s152 + $0x34] sm:$0xf]
        %v194 = vld [vmem:[%s152 + $0x38] sm:$0xf]
        %v195 = vld [vmem:[%s152 + $0x3c] sm:$0xf]
        %v196 = vld [vmem:[%s152 + $0x40] sm:$0xf]
        %v197 = vld [vmem:[%s152 + $0x44] sm:$0xf]
        %v198 = vld [vmem:[%s152 + $0x48] sm:$0xf]
        %v199 = vld [vmem:[%s152 + $0x4c] sm:$0xf]
        %v200 = vld [vmem:[%s152 + $0x50] sm:$0xf]
        %v201 = vld [vmem:[%s152 + $0x54] sm:$0xf]
        %v202 = vld [vmem:[%s152 + $0x58] sm:$0xf]
        %v203 = vld [vmem:[%s152 + $0x5c] sm:$0xf]
        %v204 = vld [vmem:[%s152 + $0x60] sm:$0xf]
        %v205 = vld [vmem:[%s152 + $0x64] sm:$0xf]
        %v206 = vld [vmem:[%s152 + $0x68] sm:$0xf]
        %v207 = vld [vmem:[%s152 + $0x6c] sm:$0xf]
        %v208 = vld [vmem:[%s152 + $0x70] sm:$0xf]
        %v209 = vld [vmem:[%s152 + $0x74] sm:$0xf]
        %v210 = vld [vmem:[%s152 + $0x78] sm:$0xf]
        %v211 = vld [vmem:[%s152 + $0x7c] sm:$0xf]
        %v212 = vld [vmem:[#allocation5] sm:$0xff]
        %v213 = vld [vmem:[#allocation5 + $0x8] sm:$0xf]
        %v214 = vld [vmem:[#allocation5 + $0xc] sm:$0xff]
        %v215 = vld [vmem:[#allocation5 + $0x14] sm:$0xf]
        %v216 = vld [vmem:[#allocation5 + $0x18] sm:$0xff]
        %v217 = vld [vmem:[#allocation5 + $0x20] sm:$0xf]
        %v218 = vld [vmem:[#allocation5 + $0x24] sm:$0xff]
        %v219 = vld [vmem:[#allocation5 + $0x2c] sm:$0xf]
        %v220 = vld [vmem:[#allocation5 + $0x30] sm:$0xff]
        %v221 = vld [vmem:[#allocation5 + $0x38] sm:$0xf]
        %v222 = vld [vmem:[#allocation5 + $0x3c] sm:$0xff]
        %v223 = vld [vmem:[#allocation5 + $0x44] sm:$0xf]
        %v224 = vld [vmem:[#allocation5 + $0x48] sm:$0xff]
        %v225 = vld [vmem:[#allocation5 + $0x50] sm:$0xf]
        %v226 = vld [vmem:[#allocation5 + $0x54] sm:$0xff]
        %v227 = vld [vmem:[#allocation5 + $0x5c] sm:$0xf]
        %v228 = vld [vmem:[#allocation5 + $0x60] sm:$0xff]
        %v229 = vld [vmem:[#allocation5 + $0x68] sm:$0xf]
        %v230 = vld [vmem:[#allocation5 + $0x6c] sm:$0xff]
        %v231 = vld [vmem:[#allocation5 + $0x74] sm:$0xf]
        %v232 = vld [vmem:[#allocation5 + $0x78] sm:$0xff]
        %v233 = vld [vmem:[#allocation5 + $0x80] sm:$0xf]
        %v234 = vld [vmem:[#allocation5 + $0x84] sm:$0xff]
        %v235 = vld [vmem:[#allocation5 + $0x8c] sm:$0xf]
        %v236 = vld [vmem:[#allocation5 + $0x90] sm:$0xff]
        %v237 = vld [vmem:[#allocation5 + $0x98] sm:$0xf]
        %v238 = vld [vmem:[#allocation5 + $0x9c] sm:$0xff]
        %v239 = vld [vmem:[#allocation5 + $0xa4] sm:$0xf]
        %v240 = vld [vmem:[#allocation5 + $0xa8] sm:$0xff]
        %v241 = vld [vmem:[#allocation5 + $0xb0] sm:$0xf]
        %v242 = vld [vmem:[#allocation5 + $0xb4] sm:$0xff]
        %v243 = vld [vmem:[#allocation5 + $0xbc] sm:$0xf]
        %v276 = vunpack.c.l.b16 %v180
        %v277 = vunpack.c.l.b16 %v181
        %v278 = vunpack.c.l.b16 %v182
        %v279 = vunpack.c.l.b16 %v183
        %v280 = vunpack.c.l.b16 %v184
        %v281 = vunpack.c.l.b16 %v185
        %v282 = vunpack.c.l.b16 %v186
        %v283 = vunpack.c.l.b16 %v187
        %v284 = vunpack.c.l.b16 %v188
        %v285 = vunpack.c.l.b16 %v189
        %v286 = vunpack.c.l.b16 %v190
        %v287 = vunpack.c.l.b16 %v191
        %v288 = vunpack.c.l.b16 %v192
        %v289 = vunpack.c.l.b16 %v193
        %v290 = vunpack.c.l.b16 %v194
        %v291 = vunpack.c.l.b16 %v195
        %v292 = vunpack.c.l.b16 %v196
        %v293 = vunpack.c.l.b16 %v197
        %v294 = vunpack.c.l.b16 %v198
        %v295 = vunpack.c.l.b16 %v199
        %v296 = vunpack.c.l.b16 %v200
        %v297 = vunpack.c.l.b16 %v201
        %v298 = vunpack.c.l.b16 %v202
        %v299 = vunpack.c.l.b16 %v203
        %v300 = vunpack.c.l.b16 %v204
        %v301 = vunpack.c.l.b16 %v205
        %v302 = vunpack.c.l.b16 %v206
        %v303 = vunpack.c.l.b16 %v207
        %v304 = vunpack.c.l.b16 %v208
        %v305 = vunpack.c.l.b16 %v209
        %v306 = vunpack.c.l.b16 %v210
        %v307 = vunpack.c.l.b16 %v211
        %v308 = vpack.c.b16 %v277, %v276
        %v309 = vpack.c.b16 %v279, %v278
        %v310 = vpack.c.b16 %v281, %v280
        %v311 = vpack.c.b16 %v283, %v282
        %v312 = vpack.c.b16 %v285, %v284
        %v313 = vpack.c.b16 %v287, %v286
        %v314 = vpack.c.b16 %v289, %v288
        %v315 = vpack.c.b16 %v291, %v290
        %v316 = vpack.c.b16 %v293, %v292
        %v317 = vpack.c.b16 %v295, %v294
        %v318 = vpack.c.b16 %v297, %v296
        %v319 = vpack.c.b16 %v299, %v298
        %v320 = vpack.c.b16 %v301, %v300
        %v321 = vpack.c.b16 %v303, %v302
        %v322 = vpack.c.b16 %v305, %v304
        %v323 = vpack.c.b16 %v307, %v306
        %v372 = vunpack.c.l.b16 %v212
        %v373 = vunpack.c.h.b16 %v212
        %v374 = vunpack.c.l.b16 %v213
        %v375 = vunpack.c.l.b16 %v214
        %v376 = vunpack.c.h.b16 %v214
        %v377 = vunpack.c.l.b16 %v215
        %v378 = vunpack.c.l.b16 %v216
        %v379 = vunpack.c.h.b16 %v216
        %v380 = vunpack.c.l.b16 %v217
        %v381 = vunpack.c.l.b16 %v218
        %v382 = vunpack.c.h.b16 %v218
        %v383 = vunpack.c.l.b16 %v219
        %v384 = vunpack.c.l.b16 %v220
        %v385 = vunpack.c.h.b16 %v220
        %v386 = vunpack.c.l.b16 %v221
        %v387 = vunpack.c.l.b16 %v222
        %v388 = vunpack.c.h.b16 %v222
        %v389 = vunpack.c.l.b16 %v223
        %v390 = vunpack.c.l.b16 %v224
        %v391 = vunpack.c.h.b16 %v224
        %v392 = vunpack.c.l.b16 %v225
        %v393 = vunpack.c.l.b16 %v226
        %v394 = vunpack.c.h.b16 %v226
        %v395 = vunpack.c.l.b16 %v227
        %v396 = vunpack.c.l.b16 %v228
        %v397 = vunpack.c.h.b16 %v228
        %v398 = vunpack.c.l.b16 %v229
        %v399 = vunpack.c.l.b16 %v230
        %v400 = vunpack.c.h.b16 %v230
        %v401 = vunpack.c.l.b16 %v231
        %v402 = vunpack.c.l.b16 %v232
        %v403 = vunpack.c.h.b16 %v232
        %v404 = vunpack.c.l.b16 %v233
        %v405 = vunpack.c.l.b16 %v234
        %v406 = vunpack.c.h.b16 %v234
        %v407 = vunpack.c.l.b16 %v235
        %v408 = vunpack.c.l.b16 %v236
        %v409 = vunpack.c.h.b16 %v236
        %v410 = vunpack.c.l.b16 %v237
        %v411 = vunpack.c.l.b16 %v238
        %v412 = vunpack.c.h.b16 %v238
        %v413 = vunpack.c.l.b16 %v239
        %v414 = vunpack.c.l.b16 %v240
        %v415 = vunpack.c.h.b16 %v240
        %v416 = vunpack.c.l.b16 %v241
        %v417 = vunpack.c.l.b16 %v242
        %v418 = vunpack.c.h.b16 %v242
        %v419 = vunpack.c.l.b16 %v243
        %v420 = vpack.c.b16 %v375, %v372
        %v421 = vpack.c.b16 %v376, %v373
        %v422 = vpack.c.b16 %v377, %v374
        %v423 = vpack.c.b16 %v381, %v378
        %v424 = vpack.c.b16 %v382, %v379
        %v425 = vpack.c.b16 %v383, %v380
        %v426 = vpack.c.b16 %v387, %v384
        %v427 = vpack.c.b16 %v388, %v385
        %v428 = vpack.c.b16 %v389, %v386
        %v429 = vpack.c.b16 %v393, %v390
        %v430 = vpack.c.b16 %v394, %v391
        %v431 = vpack.c.b16 %v395, %v392
        %v432 = vpack.c.b16 %v399, %v396
        %v433 = vpack.c.b16 %v400, %v397
        %v434 = vpack.c.b16 %v401, %v398
        %v435 = vpack.c.b16 %v405, %v402
        %v436 = vpack.c.b16 %v406, %v403
        %v437 = vpack.c.b16 %v407, %v404
        %v438 = vpack.c.b16 %v411, %v408
        %v439 = vpack.c.b16 %v412, %v409
        %v440 = vpack.c.b16 %v413, %v410
        %v441 = vpack.c.b16 %v417, %v414
        %v442 = vpack.c.b16 %v418, %v415
        %v443 = vpack.c.b16 %v419, %v416
        %468 = vmatprep.subr.bf16.mxu0 %v421
        %469 = vmatpush1.bf16.msra.mxu0 %v420
        %470 = vmatprep.subr.bf16.mxu0 %v424
        %471 = vmatpush1.bf16.msra.mxu0 %v423
        %472 = vmatprep.subr.bf16.mxu0 %v427
        %473 = vmatpush1.bf16.msra.mxu0 %v426
        %474 = vmatprep.subr.bf16.mxu0 %v430
        %475 = vmatpush1.bf16.msra.mxu0 %v429
        %476 = vmatprep.subr.bf16.mxu0 %v433
        %477 = vmatpush1.bf16.msra.mxu0 %v432
        %478 = vmatprep.subr.bf16.mxu0 %v436
        %479 = vmatpush1.bf16.msra.mxu0 %v435
        %480 = vmatprep.subr.bf16.mxu0 %v439
        %481 = vmatpush1.bf16.msra.mxu0 %v438
        %482 = vmatprep.subr.bf16.mxu0 %v442
        %483 = vmatpush1.bf16.msra.mxu0 %v441
        %484 = vmatprep.subr.bf16.mxu0 0
        %485 = vmatpush1.bf16.msra.mxu0 0
        %486 = vmatprep.subr.bf16.mxu0 0
        %487 = vmatpush1.bf16.msra.mxu0 0
        %488 = vmatprep.subr.bf16.mxu0 0
        %489 = vmatpush1.bf16.msra.mxu0 0
        %490 = vmatprep.subr.bf16.mxu0 0
        %491 = vmatpush1.bf16.msra.mxu0 0
        %492 = vmatprep.subr.bf16.mxu0 0
        %493 = vmatpush1.bf16.msra.mxu0 0
        %494 = vmatprep.subr.bf16.mxu0 0
        %495 = vmatpush1.bf16.msra.mxu0 0
        %496 = vmatprep.subr.bf16.mxu0 0
        %497 = vmatpush1.bf16.msra.mxu0 0
        %498 = vmatprep.subr.bf16.mxu0 0
        %499 = vmatpush1.bf16.msra.mxu0 0
        %500 = vmatprep.mubr.bf16.mxu0 0
        %501 = vmatmul.mubr.bf16.gmra.mrb[0].mxu0 %v308
        %v502 = vpop.f32.mrb[0].mxu0
        %v503 = vadd.f32 0.0, %v502
        %v504 = vpop.f32.mrb[0].mxu0
        %v505 = vadd.f32 0.0, %v504
        %v506 = vpop.f32.mrb[0].mxu0
        %v507 = vadd.f32 0.0, %v506
        %v508 = vpop.f32.mrb[0].mxu0
        %v509 = vadd.f32 0.0, %v508
        %510 = vmatprep.mubr.bf16.mxu0 0
        %511 = vmatmul.mubr.bf16.gmra.mrb[0].mxu0 %v309
        %v512 = vpop.f32.mrb[0].mxu0
        %v513 = vadd.f32 0.0, %v512
        %v514 = vpop.f32.mrb[0].mxu0
        %v515 = vadd.f32 0.0, %v514
        %v516 = vpop.f32.mrb[0].mxu0
        %v517 = vadd.f32 0.0, %v516
        %v518 = vpop.f32.mrb[0].mxu0
        %v519 = vadd.f32 0.0, %v518
        %520 = vmatprep.mubr.bf16.mxu0 0
        %521 = vmatmul.mubr.bf16.gmra.mrb[0].mxu0 %v310
        %v522 = vpop.f32.mrb[0].mxu0
        %v523 = vadd.f32 0.0, %v522
        %v524 = vpop.f32.mrb[0].mxu0
        %v525 = vadd.f32 0.0, %v524
        %v526 = vpop.f32.mrb[0].mxu0
        %v527 = vadd.f32 0.0, %v526
        %v528 = vpop.f32.mrb[0].mxu0
        %v529 = vadd.f32 0.0, %v528
        %530 = vmatprep.mubr.bf16.mxu0 0
        %531 = vmatmul.mubr.bf16.gmra.mrb[0].mxu0 %v311
        %v532 = vpop.f32.mrb[0].mxu0
        %v533 = vadd.f32 0.0, %v532
        %v534 = vpop.f32.mrb[0].mxu0
        %v535 = vadd.f32 0.0, %v534
        %v536 = vpop.f32.mrb[0].mxu0
        %v537 = vadd.f32 0.0, %v536
        %v538 = vpop.f32.mrb[0].mxu0
        %v539 = vadd.f32 0.0, %v538
        %540 = vmatprep.mubr.bf16.mxu0 0
        %541 = vmatmul.mubr.bf16.gmra.mrb[0].mxu0 %v312
        %v542 = vpop.f32.mrb[0].mxu0
        %v543 = vadd.f32 0.0, %v542
        %v544 = vpop.f32.mrb[0].mxu0
        %v545 = vadd.f32 0.0, %v544
        %v546 = vpop.f32.mrb[0].mxu0
        %v547 = vadd.f32 0.0, %v546
        %v548 = vpop.f32.mrb[0].mxu0
        %v549 = vadd.f32 0.0, %v548
        %550 = vmatprep.mubr.bf16.mxu0 0
        %551 = vmatmul.mubr.bf16.gmra.mrb[0].mxu0 %v313
        %v552 = vpop.f32.mrb[0].mxu0
        %v553 = vadd.f32 0.0, %v552
        %v554 = vpop.f32.mrb[0].mxu0
        %v555 = vadd.f32 0.0, %v554
        %v556 = vpop.f32.mrb[0].mxu0
        %v557 = vadd.f32 0.0, %v556
        %v558 = vpop.f32.mrb[0].mxu0
        %v559 = vadd.f32 0.0, %v558
        %560 = vmatprep.mubr.bf16.mxu0 0
        %561 = vmatmul.mubr.bf16.gmra.mrb[0].mxu0 %v314
        %v562 = vpop.f32.mrb[0].mxu0
        %v563 = vadd.f32 0.0, %v562
        %v564 = vpop.f32.mrb[0].mxu0
        %v565 = vadd.f32 0.0, %v564
        %v566 = vpop.f32.mrb[0].mxu0
        %v567 = vadd.f32 0.0, %v566
        %v568 = vpop.f32.mrb[0].mxu0
        %v569 = vadd.f32 0.0, %v568
        %570 = vmatprep.mubr.bf16.mxu0 0
        %571 = vmatmul.mubr.bf16.gmra.mrb[0].mxu0 %v315
        %v572 = vpop.f32.mrb[0].mxu0
        %v573 = vadd.f32 0.0, %v572
        %v574 = vpop.f32.mrb[0].mxu0
        %v575 = vadd.f32 0.0, %v574
        %v576 = vpop.f32.mrb[0].mxu0
        %v577 = vadd.f32 0.0, %v576
        %v578 = vpop.f32.mrb[0].mxu0
        %v579 = vadd.f32 0.0, %v578
        %580 = vmatprep.mubr.bf16.mxu0 0
        %581 = vmatmul.mubr.bf16.gmra.mrb[0].mxu0 %v316
        %v582 = vpop.f32.mrb[0].mxu0
        %v583 = vadd.f32 0.0, %v582
        %v584 = vpop.f32.mrb[0].mxu0
        %v585 = vadd.f32 0.0, %v584
        %v586 = vpop.f32.mrb[0].mxu0
        %v587 = vadd.f32 0.0, %v586
        %v588 = vpop.f32.mrb[0].mxu0
        %v589 = vadd.f32 0.0, %v588
        %590 = vmatprep.mubr.bf16.mxu0 0
        %591 = vmatmul.mubr.bf16.gmra.mrb[0].mxu0 %v317
        %v592 = vpop.f32.mrb[0].mxu0
        %v593 = vadd.f32 0.0, %v592
        %v594 = vpop.f32.mrb[0].mxu0
        %v595 = vadd.f32 0.0, %v594
        %v596 = vpop.f32.mrb[0].mxu0
        %v597 = vadd.f32 0.0, %v596
        %v598 = vpop.f32.mrb[0].mxu0
        %v599 = vadd.f32 0.0, %v598
        %600 = vmatprep.mubr.bf16.mxu0 0
        %601 = vmatmul.mubr.bf16.gmra.mrb[0].mxu0 %v318
        %v602 = vpop.f32.mrb[0].mxu0
        %v603 = vadd.f32 0.0, %v602
        %v604 = vpop.f32.mrb[0].mxu0
        %v605 = vadd.f32 0.0, %v604
        %v606 = vpop.f32.mrb[0].mxu0
        %v607 = vadd.f32 0.0, %v606
        %v608 = vpop.f32.mrb[0].mxu0
        %v609 = vadd.f32 0.0, %v608
        %610 = vmatprep.mubr.bf16.mxu0 0
        %611 = vmatmul.mubr.bf16.gmra.mrb[0].mxu0 %v319
        %v612 = vpop.f32.mrb[0].mxu0
        %v613 = vadd.f32 0.0, %v612
        %v614 = vpop.f32.mrb[0].mxu0
        %v615 = vadd.f32 0.0, %v614
        %v616 = vpop.f32.mrb[0].mxu0
        %v617 = vadd.f32 0.0, %v616
        %v618 = vpop.f32.mrb[0].mxu0
        %v619 = vadd.f32 0.0, %v618
        %620 = vmatprep.mubr.bf16.mxu0 0
        %621 = vmatmul.mubr.bf16.gmra.mrb[0].mxu0 %v320
        %v622 = vpop.f32.mrb[0].mxu0
        %v623 = vadd.f32 0.0, %v622
        %v624 = vpop.f32.mrb[0].mxu0
        %v625 = vadd.f32 0.0, %v624
        %v626 = vpop.f32.mrb[0].mxu0
        %v627 = vadd.f32 0.0, %v626
        %v628 = vpop.f32.mrb[0].mxu0
        %v629 = vadd.f32 0.0, %v628
        %630 = vmatprep.mubr.bf16.mxu0 0
        %631 = vmatmul.mubr.bf16.gmra.mrb[0].mxu0 %v321
        %v632 = vpop.f32.mrb[0].mxu0
        %v633 = vadd.f32 0.0, %v632
        %v634 = vpop.f32.mrb[0].mxu0
        %v635 = vadd.f32 0.0, %v634
        %v636 = vpop.f32.mrb[0].mxu0
        %v637 = vadd.f32 0.0, %v636
        %v638 = vpop.f32.mrb[0].mxu0
        %v639 = vadd.f32 0.0, %v638
        %640 = vmatprep.mubr.bf16.mxu0 0
        %641 = vmatmul.mubr.bf16.gmra.mrb[0].mxu0 %v322
        %v642 = vpop.f32.mrb[0].mxu0
        %v643 = vadd.f32 0.0, %v642
        %v644 = vpop.f32.mrb[0].mxu0
        %v645 = vadd.f32 0.0, %v644
        %v646 = vpop.f32.mrb[0].mxu0
        %v647 = vadd.f32 0.0, %v646
        %v648 = vpop.f32.mrb[0].mxu0
        %v649 = vadd.f32 0.0, %v648
        %650 = vmatprep.mubr.bf16.mxu0 0
        %651 = vmatmul.mubr.bf16.gmra.mrb[0].mxu0 %v323
        %v652 = vpop.f32.mrb[0].mxu0
        %v653 = vadd.f32 0.0, %v652
        %v654 = vpop.f32.mrb[0].mxu0
        %v655 = vadd.f32 0.0, %v654
        %v656 = vpop.f32.mrb[0].mxu0
        %v657 = vadd.f32 0.0, %v656
        %v658 = vpop.f32.mrb[0].mxu0
        %v659 = vadd.f32 0.0, %v658
        %660 = vdwg.mxu0
        %661 = vmatprep.subr.bf16.mxu0 0
        %662 = vmatpush1.bf16.msra.mxu0 %v422
        %663 = vmatprep.subr.bf16.mxu0 0
        %664 = vmatpush1.bf16.msra.mxu0 %v425
        %665 = vmatprep.subr.bf16.mxu0 0
        %666 = vmatpush1.bf16.msra.mxu0 %v428
        %667 = vmatprep.subr.bf16.mxu0 0
        %668 = vmatpush1.bf16.msra.mxu0 %v431
        %669 = vmatprep.subr.bf16.mxu0 0
        %670 = vmatpush1.bf16.msra.mxu0 %v434
        %671 = vmatprep.subr.bf16.mxu0 0
        %672 = vmatpush1.bf16.msra.mxu0 %v437
        %673 = vmatprep.subr.bf16.mxu0 0
        %674 = vmatpush1.bf16.msra.mxu0 %v440
        %675 = vmatprep.subr.bf16.mxu0 0
        %676 = vmatpush1.bf16.msra.mxu0 %v443
        %677 = vmatprep.subr.bf16.mxu0 0
        %678 = vmatpush1.bf16.msra.mxu0 0
        %679 = vmatprep.subr.bf16.mxu0 0
        %680 = vmatpush1.bf16.msra.mxu0 0
        %681 = vmatprep.subr.bf16.mxu0 0
        %682 = vmatpush1.bf16.msra.mxu0 0
        %683 = vmatprep.subr.bf16.mxu0 0
        %684 = vmatpush1.bf16.msra.mxu0 0
        %685 = vmatprep.subr.bf16.mxu0 0
        %686 = vmatpush1.bf16.msra.mxu0 0
        %687 = vmatprep.subr.bf16.mxu0 0
        %688 = vmatpush1.bf16.msra.mxu0 0
        %689 = vmatprep.subr.bf16.mxu0 0
        %690 = vmatpush1.bf16.msra.mxu0 0
        %691 = vmatprep.subr.bf16.mxu0 0
        %692 = vmatpush1.bf16.msra.mxu0 0
        %693 = vmatprep.mubr.bf16.mxu0 0
        %694 = vmatmul.mubr.bf16.gmra.mrb[0].mxu0 %v308
        %v695 = vpop.f32.mrb[0].mxu0
        %v696 = vadd.f32 0.0, %v695
        %v697 = vpop.f32.mrb[0].mxu0
        %v698 = vpop.f32.mrb[0].mxu0
        %v699 = vadd.f32 0.0, %v698
        %v700 = vpop.f32.mrb[0].mxu0
        %701 = vmatprep.mubr.bf16.mxu0 0
        %702 = vmatmul.mubr.bf16.gmra.mrb[0].mxu0 %v309
        %v703 = vpop.f32.mrb[0].mxu0
        %v704 = vadd.f32 0.0, %v703
        %v705 = vpop.f32.mrb[0].mxu0
        %v706 = vpop.f32.mrb[0].mxu0
        %v707 = vadd.f32 0.0, %v706
        %v708 = vpop.f32.mrb[0].mxu0
        %709 = vmatprep.mubr.bf16.mxu0 0
        %710 = vmatmul.mubr.bf16.gmra.mrb[0].mxu0 %v310
        %v711 = vpop.f32.mrb[0].mxu0
        %v712 = vadd.f32 0.0, %v711
        %v713 = vpop.f32.mrb[0].mxu0
        %v714 = vpop.f32.mrb[0].mxu0
        %v715 = vadd.f32 0.0, %v714
        %v716 = vpop.f32.mrb[0].mxu0
        %717 = vmatprep.mubr.bf16.mxu0 0
        %718 = vmatmul.mubr.bf16.gmra.mrb[0].mxu0 %v311
        %v719 = vpop.f32.mrb[0].mxu0
        %v720 = vadd.f32 0.0, %v719
        %v721 = vpop.f32.mrb[0].mxu0
        %v722 = vpop.f32.mrb[0].mxu0
        %v723 = vadd.f32 0.0, %v722
        %v724 = vpop.f32.mrb[0].mxu0
        %725 = vmatprep.mubr.bf16.mxu0 0
        %726 = vmatmul.mubr.bf16.gmra.mrb[0].mxu0 %v312
        %v727 = vpop.f32.mrb[0].mxu0
        %v728 = vadd.f32 0.0, %v727
        %v729 = vpop.f32.mrb[0].mxu0
        %v730 = vpop.f32.mrb[0].mxu0
        %v731 = vadd.f32 0.0, %v730
        %v732 = vpop.f32.mrb[0].mxu0
        %733 = vmatprep.mubr.bf16.mxu0 0
        %734 = vmatmul.mubr.bf16.gmra.mrb[0].mxu0 %v313
        %v735 = vpop.f32.mrb[0].mxu0
        %v736 = vadd.f32 0.0, %v735
        %v737 = vpop.f32.mrb[0].mxu0
        %v738 = vpop.f32.mrb[0].mxu0
        %v739 = vadd.f32 0.0, %v738
        %v740 = vpop.f32.mrb[0].mxu0
        %741 = vmatprep.mubr.bf16.mxu0 0
        %742 = vmatmul.mubr.bf16.gmra.mrb[0].mxu0 %v314
        %v743 = vpop.f32.mrb[0].mxu0
        %v744 = vadd.f32 0.0, %v743
        %v745 = vpop.f32.mrb[0].mxu0
        %v746 = vpop.f32.mrb[0].mxu0
        %v747 = vadd.f32 0.0, %v746
        %v748 = vpop.f32.mrb[0].mxu0
        %749 = vmatprep.mubr.bf16.mxu0 0
        %750 = vmatmul.mubr.bf16.gmra.mrb[0].mxu0 %v315
        %v751 = vpop.f32.mrb[0].mxu0
        %v752 = vadd.f32 0.0, %v751
        %v753 = vpop.f32.mrb[0].mxu0
        %v754 = vpop.f32.mrb[0].mxu0
        %v755 = vadd.f32 0.0, %v754
        %v756 = vpop.f32.mrb[0].mxu0
        %757 = vmatprep.mubr.bf16.mxu0 0
        %758 = vmatmul.mubr.bf16.gmra.mrb[0].mxu0 %v316
        %v759 = vpop.f32.mrb[0].mxu0
        %v760 = vadd.f32 0.0, %v759
        %v761 = vpop.f32.mrb[0].mxu0
        %v762 = vpop.f32.mrb[0].mxu0
        %v763 = vadd.f32 0.0, %v762
        %v764 = vpop.f32.mrb[0].mxu0
        %765 = vmatprep.mubr.bf16.mxu0 0
        %766 = vmatmul.mubr.bf16.gmra.mrb[0].mxu0 %v317
        %v767 = vpop.f32.mrb[0].mxu0
        %v768 = vadd.f32 0.0, %v767
        %v769 = vpop.f32.mrb[0].mxu0
        %v770 = vpop.f32.mrb[0].mxu0
        %v771 = vadd.f32 0.0, %v770
        %v772 = vpop.f32.mrb[0].mxu0
        %773 = vmatprep.mubr.bf16.mxu0 0
        %774 = vmatmul.mubr.bf16.gmra.mrb[0].mxu0 %v318
        %v775 = vpop.f32.mrb[0].mxu0
        %v776 = vadd.f32 0.0, %v775
        %v777 = vpop.f32.mrb[0].mxu0
        %v778 = vpop.f32.mrb[0].mxu0
        %v779 = vadd.f32 0.0, %v778
        %v780 = vpop.f32.mrb[0].mxu0
        %781 = vmatprep.mubr.bf16.mxu0 0
        %782 = vmatmul.mubr.bf16.gmra.mrb[0].mxu0 %v319
        %v783 = vpop.f32.mrb[0].mxu0
        %v784 = vadd.f32 0.0, %v783
        %v785 = vpop.f32.mrb[0].mxu0
        %v786 = vpop.f32.mrb[0].mxu0
        %v787 = vadd.f32 0.0, %v786
        %v788 = vpop.f32.mrb[0].mxu0
        %789 = vmatprep.mubr.bf16.mxu0 0
        %790 = vmatmul.mubr.bf16.gmra.mrb[0].mxu0 %v320
        %v791 = vpop.f32.mrb[0].mxu0
        %v792 = vadd.f32 0.0, %v791
        %v793 = vpop.f32.mrb[0].mxu0
        %v794 = vpop.f32.mrb[0].mxu0
        %v795 = vadd.f32 0.0, %v794
        %v796 = vpop.f32.mrb[0].mxu0
        %797 = vmatprep.mubr.bf16.mxu0 0
        %798 = vmatmul.mubr.bf16.gmra.mrb[0].mxu0 %v321
        %v799 = vpop.f32.mrb[0].mxu0
        %v800 = vadd.f32 0.0, %v799
        %v801 = vpop.f32.mrb[0].mxu0
        %v802 = vpop.f32.mrb[0].mxu0
        %v803 = vadd.f32 0.0, %v802
        %v804 = vpop.f32.mrb[0].mxu0
        %805 = vmatprep.mubr.bf16.mxu0 0
        %806 = vmatmul.mubr.bf16.gmra.mrb[0].mxu0 %v322
        %v807 = vpop.f32.mrb[0].mxu0
        %v808 = vadd.f32 0.0, %v807
        %v809 = vpop.f32.mrb[0].mxu0
        %v810 = vpop.f32.mrb[0].mxu0
        %v811 = vadd.f32 0.0, %v810
        %v812 = vpop.f32.mrb[0].mxu0
        %813 = vmatprep.mubr.bf16.mxu0 0
        %814 = vmatmul.mubr.bf16.gmra.mrb[0].mxu0 %v323
        %v815 = vpop.f32.mrb[0].mxu0
        %v816 = vadd.f32 0.0, %v815
        %v817 = vpop.f32.mrb[0].mxu0
        %v818 = vpop.f32.mrb[0].mxu0
        %v819 = vadd.f32 0.0, %v818
        %v820 = vpop.f32.mrb[0].mxu0
        %821 = vdwg.mxu0
        %v822 = vpack.c.bf16 %v507, %v503
        %v823 = vpack.c.bf16 %v509, %v505
        %v824 = vpack.c.bf16 %v699, %v696
        %v825 = vpack.c.bf16 %v517, %v513
        %v826 = vpack.c.bf16 %v519, %v515
        %v827 = vpack.c.bf16 %v707, %v704
        %v828 = vpack.c.bf16 %v527, %v523
        %v829 = vpack.c.bf16 %v529, %v525
        %v830 = vpack.c.bf16 %v715, %v712
        %v831 = vpack.c.bf16 %v537, %v533
        %v832 = vpack.c.bf16 %v539, %v535
        %v833 = vpack.c.bf16 %v723, %v720
        %v834 = vpack.c.bf16 %v547, %v543
        %v835 = vpack.c.bf16 %v549, %v545
        %v836 = vpack.c.bf16 %v731, %v728
        %v837 = vpack.c.bf16 %v557, %v553
        %v838 = vpack.c.bf16 %v559, %v555
        %v839 = vpack.c.bf16 %v739, %v736
        %v840 = vpack.c.bf16 %v567, %v563
        %v841 = vpack.c.bf16 %v569, %v565
        %v842 = vpack.c.bf16 %v747, %v744
        %v843 = vpack.c.bf16 %v577, %v573
        %v844 = vpack.c.bf16 %v579, %v575
        %v845 = vpack.c.bf16 %v755, %v752
        %v846 = vpack.c.bf16 %v587, %v583
        %v847 = vpack.c.bf16 %v589, %v585
        %v848 = vpack.c.bf16 %v763, %v760
        %v849 = vpack.c.bf16 %v597, %v593
        %v850 = vpack.c.bf16 %v599, %v595
        %v851 = vpack.c.bf16 %v771, %v768
        %v852 = vpack.c.bf16 %v607, %v603
        %v853 = vpack.c.bf16 %v609, %v605
        %v854 = vpack.c.bf16 %v779, %v776
        %v855 = vpack.c.bf16 %v617, %v613
        %v856 = vpack.c.bf16 %v619, %v615
        %v857 = vpack.c.bf16 %v787, %v784
        %v858 = vpack.c.bf16 %v627, %v623
        %v859 = vpack.c.bf16 %v629, %v625
        %v860 = vpack.c.bf16 %v795, %v792
        %v861 = vpack.c.bf16 %v637, %v633
        %v862 = vpack.c.bf16 %v639, %v635
        %v863 = vpack.c.bf16 %v803, %v800
        %v864 = vpack.c.bf16 %v647, %v643
        %v865 = vpack.c.bf16 %v649, %v645
        %v866 = vpack.c.bf16 %v811, %v808
        %v867 = vpack.c.bf16 %v657, %v653
        %v868 = vpack.c.bf16 %v659, %v655
        %v869 = vpack.c.bf16 %v819, %v816
        %v918 = vunpack.c.l.b16 %v822
        %v919 = vunpack.c.l.b16 %v823
        %v920 = vunpack.c.l.b16 %v824
        %v921 = vunpack.c.h.b16 %v822
        %v922 = vunpack.c.h.b16 %v823
        %v923 = vunpack.c.h.b16 %v824
        %v924 = vunpack.c.l.b16 %v825
        %v925 = vunpack.c.l.b16 %v826
        %v926 = vunpack.c.l.b16 %v827
        %v927 = vunpack.c.h.b16 %v825
        %v928 = vunpack.c.h.b16 %v826
        %v929 = vunpack.c.h.b16 %v827
        %v930 = vunpack.c.l.b16 %v828
        %v931 = vunpack.c.l.b16 %v829
        %v932 = vunpack.c.l.b16 %v830
        %v933 = vunpack.c.h.b16 %v828
        %v934 = vunpack.c.h.b16 %v829
        %v935 = vunpack.c.h.b16 %v830
        %v936 = vunpack.c.l.b16 %v831
        %v937 = vunpack.c.l.b16 %v832
        %v938 = vunpack.c.l.b16 %v833
        %v939 = vunpack.c.h.b16 %v831
        %v940 = vunpack.c.h.b16 %v832
        %v941 = vunpack.c.h.b16 %v833
        %v942 = vunpack.c.l.b16 %v834
        %v943 = vunpack.c.l.b16 %v835
        %v944 = vunpack.c.l.b16 %v836
        %v945 = vunpack.c.h.b16 %v834
        %v946 = vunpack.c.h.b16 %v835
        %v947 = vunpack.c.h.b16 %v836
        %v948 = vunpack.c.l.b16 %v837
        %v949 = vunpack.c.l.b16 %v838
        %v950 = vunpack.c.l.b16 %v839
        %v951 = vunpack.c.h.b16 %v837
        %v952 = vunpack.c.h.b16 %v838
        %v953 = vunpack.c.h.b16 %v839
        %v954 = vunpack.c.l.b16 %v840
        %v955 = vunpack.c.l.b16 %v841
        %v956 = vunpack.c.l.b16 %v842
        %v957 = vunpack.c.h.b16 %v840
        %v958 = vunpack.c.h.b16 %v841
        %v959 = vunpack.c.h.b16 %v842
        %v960 = vunpack.c.l.b16 %v843
        %v961 = vunpack.c.l.b16 %v844
        %v962 = vunpack.c.l.b16 %v845
        %v963 = vunpack.c.h.b16 %v843
        %v964 = vunpack.c.h.b16 %v844
        %v965 = vunpack.c.h.b16 %v845
        %v966 = vunpack.c.l.b16 %v846
        %v967 = vunpack.c.l.b16 %v847
        %v968 = vunpack.c.l.b16 %v848
        %v969 = vunpack.c.h.b16 %v846
        %v970 = vunpack.c.h.b16 %v847
        %v971 = vunpack.c.h.b16 %v848
        %v972 = vunpack.c.l.b16 %v849
        %v973 = vunpack.c.l.b16 %v850
        %v974 = vunpack.c.l.b16 %v851
        %v975 = vunpack.c.h.b16 %v849
        %v976 = vunpack.c.h.b16 %v850
        %v977 = vunpack.c.h.b16 %v851
        %v978 = vunpack.c.l.b16 %v852
        %v979 = vunpack.c.l.b16 %v853
        %v980 = vunpack.c.l.b16 %v854
        %v981 = vunpack.c.h.b16 %v852
        %v982 = vunpack.c.h.b16 %v853
        %v983 = vunpack.c.h.b16 %v854
        %v984 = vunpack.c.l.b16 %v855
        %v985 = vunpack.c.l.b16 %v856
        %v986 = vunpack.c.l.b16 %v857
        %v987 = vunpack.c.h.b16 %v855
        %v988 = vunpack.c.h.b16 %v856
        %v989 = vunpack.c.h.b16 %v857
        %v990 = vunpack.c.l.b16 %v858
        %v991 = vunpack.c.l.b16 %v859
        %v992 = vunpack.c.l.b16 %v860
        %v993 = vunpack.c.h.b16 %v858
        %v994 = vunpack.c.h.b16 %v859
        %v995 = vunpack.c.h.b16 %v860
        %v996 = vunpack.c.l.b16 %v861
        %v997 = vunpack.c.l.b16 %v862
        %v998 = vunpack.c.l.b16 %v863
        %v999 = vunpack.c.h.b16 %v861
        %v1000 = vunpack.c.h.b16 %v862
        %v1001 = vunpack.c.h.b16 %v863
        %v1002 = vunpack.c.l.b16 %v864
        %v1003 = vunpack.c.l.b16 %v865
        %v1004 = vunpack.c.l.b16 %v866
        %v1005 = vunpack.c.h.b16 %v864
        %v1006 = vunpack.c.h.b16 %v865
        %v1007 = vunpack.c.h.b16 %v866
        %v1008 = vunpack.c.l.b16 %v867
        %v1009 = vunpack.c.l.b16 %v868
        %v1010 = vunpack.c.l.b16 %v869
        %v1011 = vunpack.c.h.b16 %v867
        %v1012 = vunpack.c.h.b16 %v868
        %v1013 = vunpack.c.h.b16 %v869
        %v1014 = vpack.c.b16 %v919, %v918
        %v1015 = vpack.c.b16 %v920, %v920
        %v1016 = vpack.c.b16 %v922, %v921
        %v1017 = vpack.c.b16 %v923, %v923
        %v1018 = vpack.c.b16 %v925, %v924
        %v1019 = vpack.c.b16 %v926, %v926
        %v1020 = vpack.c.b16 %v928, %v927
        %v1021 = vpack.c.b16 %v929, %v929
        %v1022 = vpack.c.b16 %v931, %v930
        %v1023 = vpack.c.b16 %v932, %v932
        %v1024 = vpack.c.b16 %v934, %v933
        %v1025 = vpack.c.b16 %v935, %v935
        %v1026 = vpack.c.b16 %v937, %v936
        %v1027 = vpack.c.b16 %v938, %v938
        %v1028 = vpack.c.b16 %v940, %v939
        %v1029 = vpack.c.b16 %v941, %v941
        %v1030 = vpack.c.b16 %v943, %v942
        %v1031 = vpack.c.b16 %v944, %v944
        %v1032 = vpack.c.b16 %v946, %v945
        %v1033 = vpack.c.b16 %v947, %v947
        %v1034 = vpack.c.b16 %v949, %v948
        %v1035 = vpack.c.b16 %v950, %v950
        %v1036 = vpack.c.b16 %v952, %v951
        %v1037 = vpack.c.b16 %v953, %v953
        %v1038 = vpack.c.b16 %v955, %v954
        %v1039 = vpack.c.b16 %v956, %v956
        %v1040 = vpack.c.b16 %v958, %v957
        %v1041 = vpack.c.b16 %v959, %v959
        %v1042 = vpack.c.b16 %v961, %v960
        %v1043 = vpack.c.b16 %v962, %v962
        %v1044 = vpack.c.b16 %v964, %v963
        %v1045 = vpack.c.b16 %v965, %v965
        %v1046 = vpack.c.b16 %v967, %v966
        %v1047 = vpack.c.b16 %v968, %v968
        %v1048 = vpack.c.b16 %v970, %v969
        %v1049 = vpack.c.b16 %v971, %v971
        %v1050 = vpack.c.b16 %v973, %v972
        %v1051 = vpack.c.b16 %v974, %v974
        %v1052 = vpack.c.b16 %v976, %v975
        %v1053 = vpack.c.b16 %v977, %v977
        %v1054 = vpack.c.b16 %v979, %v978
        %v1055 = vpack.c.b16 %v980, %v980
        %v1056 = vpack.c.b16 %v982, %v981
        %v1057 = vpack.c.b16 %v983, %v983
        %v1058 = vpack.c.b16 %v985, %v984
        %v1059 = vpack.c.b16 %v986, %v986
        %v1060 = vpack.c.b16 %v988, %v987
        %v1061 = vpack.c.b16 %v989, %v989
        %v1062 = vpack.c.b16 %v991, %v990
        %v1063 = vpack.c.b16 %v992, %v992
        %v1064 = vpack.c.b16 %v994, %v993
        %v1065 = vpack.c.b16 %v995, %v995
        %v1066 = vpack.c.b16 %v997, %v996
        %v1067 = vpack.c.b16 %v998, %v998
        %v1068 = vpack.c.b16 %v1000, %v999
        %v1069 = vpack.c.b16 %v1001, %v1001
        %v1070 = vpack.c.b16 %v1003, %v1002
        %v1071 = vpack.c.b16 %v1004, %v1004
        %v1072 = vpack.c.b16 %v1006, %v1005
        %v1073 = vpack.c.b16 %v1007, %v1007
        %v1074 = vpack.c.b16 %v1009, %v1008
        %v1075 = vpack.c.b16 %v1010, %v1010
        %v1076 = vpack.c.b16 %v1012, %v1011
        %v1077 = vpack.c.b16 %v1013, %v1013
        %1142 = vst [vmem:[%s176] sm:$0xff] %v1014
        %1143 = vst [vmem:[%s176 + $0x8] sm:$0xf] %v1015
        %1144 = vst [vmem:[%s176 + $0xc] sm:$0xff] %v1016
        %1145 = vst [vmem:[%s176 + $0x14] sm:$0xf] %v1017
        %1146 = vst [vmem:[%s176 + $0x18] sm:$0xff] %v1018
        %1147 = vst [vmem:[%s176 + $0x20] sm:$0xf] %v1019
        %1148 = vst [vmem:[%s176 + $0x24] sm:$0xff] %v1020
        %1149 = vst [vmem:[%s176 + $0x2c] sm:$0xf] %v1021
        %1150 = vst [vmem:[%s176 + $0x30] sm:$0xff] %v1022
        %1151 = vst [vmem:[%s176 + $0x38] sm:$0xf] %v1023
        %1152 = vst [vmem:[%s176 + $0x3c] sm:$0xff] %v1024
        %1153 = vst [vmem:[%s176 + $0x44] sm:$0xf] %v1025
        %1154 = vst [vmem:[%s176 + $0x48] sm:$0xff] %v1026
        %1155 = vst [vmem:[%s176 + $0x50] sm:$0xf] %v1027
        %1156 = vst [vmem:[%s176 + $0x54] sm:$0xff] %v1028
        %1157 = vst [vmem:[%s176 + $0x5c] sm:$0xf] %v1029
        %1158 = vst [vmem:[%s176 + $0x60] sm:$0xff] %v1030
        %1159 = vst [vmem:[%s176 + $0x68] sm:$0xf] %v1031
        %1160 = vst [vmem:[%s176 + $0x6c] sm:$0xff] %v1032
        %1161 = vst [vmem:[%s176 + $0x74] sm:$0xf] %v1033
        %1162 = vst [vmem:[%s176 + $0x78] sm:$0xff] %v1034
        %1163 = vst [vmem:[%s176 + $0x80] sm:$0xf] %v1035
        %1164 = vst [vmem:[%s176 + $0x84] sm:$0xff] %v1036
        %1165 = vst [vmem:[%s176 + $0x8c] sm:$0xf] %v1037
        %1166 = vst [vmem:[%s176 + $0x90] sm:$0xff] %v1038
        %1167 = vst [vmem:[%s176 + $0x98] sm:$0xf] %v1039
        %1168 = vst [vmem:[%s176 + $0x9c] sm:$0xff] %v1040
        %1169 = vst [vmem:[%s176 + $0xa4] sm:$0xf] %v1041
        %1170 = vst [vmem:[%s176 + $0xa8] sm:$0xff] %v1042
        %1171 = vst [vmem:[%s176 + $0xb0] sm:$0xf] %v1043
        %1172 = vst [vmem:[%s176 + $0xb4] sm:$0xff] %v1044
        %1173 = vst [vmem:[%s176 + $0xbc] sm:$0xf] %v1045
        %1174 = vst [vmem:[%s176 + $0xc0] sm:$0xff] %v1046
        %1175 = vst [vmem:[%s176 + $0xc8] sm:$0xf] %v1047
        %1176 = vst [vmem:[%s176 + $0xcc] sm:$0xff] %v1048
        %1177 = vst [vmem:[%s176 + $0xd4] sm:$0xf] %v1049
        %1178 = vst [vmem:[%s176 + $0xd8] sm:$0xff] %v1050
        %1179 = vst [vmem:[%s176 + $0xe0] sm:$0xf] %v1051
        %1180 = vst [vmem:[%s176 + $0xe4] sm:$0xff] %v1052
        %1181 = vst [vmem:[%s176 + $0xec] sm:$0xf] %v1053
        %1182 = vst [vmem:[%s176 + $0xf0] sm:$0xff] %v1054
        %1183 = vst [vmem:[%s176 + $0xf8] sm:$0xf] %v1055
        %1184 = vst [vmem:[%s176 + $0xfc] sm:$0xff] %v1056
        %1185 = vst [vmem:[%s176 + $0x104] sm:$0xf] %v1057
        %1186 = vst [vmem:[%s176 + $0x108] sm:$0xff] %v1058
        %1187 = vst [vmem:[%s176 + $0x110] sm:$0xf] %v1059
        %1188 = vst [vmem:[%s176 + $0x114] sm:$0xff] %v1060
        %1189 = vst [vmem:[%s176 + $0x11c] sm:$0xf] %v1061
        %1190 = vst [vmem:[%s176 + $0x120] sm:$0xff] %v1062
        %1191 = vst [vmem:[%s176 + $0x128] sm:$0xf] %v1063
        %1192 = vst [vmem:[%s176 + $0x12c] sm:$0xff] %v1064
        %1193 = vst [vmem:[%s176 + $0x134] sm:$0xf] %v1065
        %1194 = vst [vmem:[%s176 + $0x138] sm:$0xff] %v1066
        %1195 = vst [vmem:[%s176 + $0x140] sm:$0xf] %v1067
        %1196 = vst [vmem:[%s176 + $0x144] sm:$0xff] %v1068
        %1197 = vst [vmem:[%s176 + $0x14c] sm:$0xf] %v1069
        %1198 = vst [vmem:[%s176 + $0x150] sm:$0xff] %v1070
        %1199 = vst [vmem:[%s176 + $0x158] sm:$0xf] %v1071
        %1200 = vst [vmem:[%s176 + $0x15c] sm:$0xff] %v1072
        %1201 = vst [vmem:[%s176 + $0x164] sm:$0xf] %v1073
        %1202 = vst [vmem:[%s176 + $0x168] sm:$0xff] %v1074
        %1203 = vst [vmem:[%s176 + $0x170] sm:$0xf] %v1075
        %1204 = vst [vmem:[%s176 + $0x174] sm:$0xff] %v1076
        %1205 = vst [vmem:[%s176 + $0x17c] sm:$0xf] %v1077
        %s1206 = sand.u32 %s75, 1
        %s1207 = scalar_lea.sflag [#allocation4], %s1206
        %s1208 = sand.u32 %s75, 1
        %s1209 = smul.addr %s1208, 384
        %s1210 = scalar_lea.vmem [#allocation7], %s1209
        // Predicated region
        $region37: #{tpu_custom_call.1} parent=27 // pred_check
          %p1211 = pneg %p85
        $region38: #{tpu_custom_call.1} parent=27 // pred_check_branch
          %1213 = sbr.rel (%p1211) target = $region40
        $region39: #{tpu_custom_call.1} parent=27 // pred_region
          %s1214 = smul.u32 32, %s20
          %s1216 = ssub.s32 6144, 6144
          %1217 = vsyncadd %s1207, %s1216
          %s1218 = smul.addr %s1214, 3
          %s1219 = smul.addr %s1218, 64
          %s1220 = scalar_lea.hbm %s2, %s1219
          %s1221 = sshll.u32 %s1210, 4
          %s1222 = int_to_ptr.vmem [resolvable:$true] %s1221
          %1227 = dma.vmem_to_hbm [thread:$0]  %s1222, 6144, %s1220, %s1207, 192, 192, 12
        $region40: #{tpu_custom_call.1} parent=27 // pred_fallthru
          _
      $region28: #{tpu_custom_call.1} parent=5 // pred_fallthru
        _
      %p1228 = scmp.le.s32.totalorder 2, %s15
      // Predicated region
      $region41: #{tpu_custom_call.1} parent=5 // pred_check
        %p1229 = pneg %p1228
      $region42: #{tpu_custom_call.1} parent=5 // pred_check_branch
        %1231 = sbr.rel (%p1229) target = $region44
      $region43: #{tpu_custom_call.1} parent=5 // pred_region
        %s1232 = ssub.s32 %s15, 2
        // Predicated region
        $region45: #{tpu_custom_call.1} parent=43 // pred_check
          %p1233 = pneg %p91
        $region46: #{tpu_custom_call.1} parent=43 // pred_check_branch
          %1235 = sbr.rel (%p1233) target = $region48
        $region47: #{tpu_custom_call.1} parent=43 // pred_region
          %s1236 = sand.u32 %s76, 1
          %s1237 = scalar_lea.sflag [#allocation4], %s1236
          %s1238 = sand.u32 %s76, 1
          %s1239 = smul.addr %s1238, 384
          %s1240 = scalar_lea.vmem [#allocation7], %s1239
          %1241 = dma.done %s1237, 6144
        $region48: #{tpu_custom_call.1} parent=43 // pred_fallthru
          _
      $region44: #{tpu_custom_call.1} parent=5 // pred_fallthru
        _
    $region6: #{tpu_custom_call.1} parent=1 // loop_footer
      %s19 = sadd.s32 1, %s15
    $region7: #{tpu_custom_call.1} parent=1 // loop_footer_branch
      %14 = sbr.rel target = $region3
    $region8: #{tpu_custom_call.1} parent=1 // loop_exit
      _
    %1242 = vsyncpa [#allocation3], 1
    %s1243 = scalar_lea.sflag [#allocation3], 1
    %1244 = vsyncpa %s1243, 1
    %1245 = vsyncpa [#allocation6], 1
    %1246 = vsyncpa [#allocation4], 1
    %s1247 = scalar_lea.sflag [#allocation4], 1
    %1248 = vsyncpa %s1247, 1

</llo_original>
